<compile_context>
chip_gen: v5e
topology: v5e:2x2
jax: 0.10.0
libtpu: 0.0.40
codegen_flags: <defaults>
</compile_context>

<pallas_src>
import functools
from typing import NamedTuple

import jax
import jax.numpy as jnp
from jax.experimental import pallas as pl
from jax.experimental.pallas import tpu as pltpu


_LANE = 128      # vreg lane width: feature dims padded to a multiple of this
_SUBLANE = 8     # f32 sublane height: batch tile kept a multiple of this


def _round_up(v, m):
    return (v + m - 1) // m * m


def _cdiv(a, b):
    return -(-a // b)


def _vmem_budget_bytes():
    """(budget_for_tiling, vmem_limit_cap) chosen per TPU generation."""
    cap = 64 << 20
    try:
        info = pltpu.get_tpu_info()
        cap = int(getattr(info, "vmem_capacity_bytes", cap))
    except Exception:
        pass
    if cap >= (96 << 20):            # v5e / v6e: 128 MiB physical VMEM
        return 104 << 20, 112 << 20
    return 52 << 20, 58 << 20        # v7x: 64 MiB physical VMEM per TC


# ----------------------------------------------------------------------------
# Kernels
# ----------------------------------------------------------------------------
def _apply_layernorm(h, gamma, beta, n_real, eps, masked):
    """Two-pass LayerNorm over the last axis of f32 `h` (padded lanes masked)."""
    inv_n = 1.0 / float(n_real)
    mean = jnp.sum(h, axis=-1, keepdims=True) * inv_n
    c = h - mean
    if masked:
        lane = jax.lax.broadcasted_iota(jnp.int32, h.shape, h.ndim - 1)
        c = jnp.where(lane < n_real, c, 0.0)
    var = jnp.sum(c * c, axis=-1, keepdims=True) * inv_n
    scale = jax.lax.rsqrt(var + eps) * gamma       # fold gamma into the scale
    return c * scale + beta


def _mlp_fused_kernel(*refs, num_linear, layer_norm, n_out_real, eps, masked_ln):
    """Whole MLP forward on one batch tile; all weights resident in VMEM.

    refs = (x_ref, w0, b0, w1, b1, ..., [gamma, beta], o_ref)
    ReLU follows every Linear except the last (matches the PyTorch Sequential).
    """
    x_ref = refs[0]
    o_ref = refs[-1]
    params = refs[1:-1]

    h = x_ref[...]
    for l in range(num_linear):
        w = params[2 * l][...]
        b = params[2 * l + 1][...]                      # pre-cast f32 [1, out]
        a = h if h.dtype == w.dtype else h.astype(w.dtype)   # bf16 MXU fast path
        h = jnp.dot(a, w, preferred_element_type=jnp.float32) + b
        if l < num_linear - 1:
            h = jnp.maximum(h, 0.0)                     # f32 epilogue (VPU)

    if layer_norm:
        gamma = params[2 * num_linear][...]             # pre-cast f32
        beta = params[2 * num_linear + 1][...]
        h = _apply_layernorm(h, gamma, beta, n_out_real, eps, masked_ln)

    o_ref[...] = h.astype(o_ref.dtype)


def _linear_kernel(x_ref, w_ref, b_ref, o_ref, acc_ref, *, relu):
    """One Linear (+ optional ReLU), K-tiled with an f32 scratch accumulator."""
    k = pl.program_id(2)

    @pl.when(k == 0)
    def _():
        acc_ref[...] = jnp.zeros_like(acc_ref)

    a = x_ref[...]
    w = w_ref[...]
    if a.dtype != w.dtype:
        a = a.astype(w.dtype)
    acc_ref[...] += jnp.dot(a, w, preferred_element_type=jnp.float32)

    @pl.when(k == pl.num_programs(2) - 1)
    def _():
        h = acc_ref[...] + b_ref[...]
        if relu:
            h = jnp.maximum(h, 0.0)
        o_ref[...] = h.astype(o_ref.dtype)


def _layernorm_kernel(h_ref, g_ref, b_ref, o_ref, *, n_real, eps, masked):
    h = h_ref[...].astype(jnp.float32)
    o_ref[...] = _apply_layernorm(
        h, g_ref[...], b_ref[...], n_real, eps, masked
    ).astype(o_ref.dtype)


# ----------------------------------------------------------------------------
# Parameter preparation (done once, outside the forward call)
# ----------------------------------------------------------------------------
class PreparedMLP(NamedTuple):
    weights: tuple      # padded [Kpad, Npad], native or bf16 dtype
    biases: tuple       # padded f32 [1, Npad]
    ln: object          # (gamma, beta) padded f32 [1, Npad] or None
    pdims: tuple        # padded feature dims: (n_in_pad, h_pad, ..., n_out_pad)
    n_in: int
    n_out: int

    @property
    def num_linear(self):
        return len(self.weights)

    @property
    def layer_norm(self):
        return self.ln is not None

    @property
    def flat_params(self):
        flat = []
        for w, b in zip(self.weights, self.biases):
            flat += [w, b]
        if self.ln is not None:
            flat += list(self.ln)
        return flat

    @property
    def param_bytes(self):
        return sum(int(p.size) * p.dtype.itemsize for p in self.flat_params)


def prepare_mlp_params(weights, biases, ln_params=None, *, mxu_dtype=None):
    """Pad/cast parameters once.

    weights:   list of [in, out] matrices (transposed from PyTorch's [out, in])
    biases:    list of [out] vectors
    ln_params: optional (gamma, beta), each [n_out]
    mxu_dtype: optional dtype (e.g. jnp.bfloat16) for the matmul operands —
               halves weight DMA and hits the bf16-native MXU on v6e/v7x.
    IMPORTANT: padded weight columns / bias lanes MUST stay exactly zero; the
    LayerNorm statistics rely on it.
    """
    n_in = int(weights[0].shape[0])
    n_out = int(weights[-1].shape[1])
    dims = [n_in] + [int(w.shape[1]) for w in weights]
    pdims = tuple(_round_up(d, _LANE) for d in dims)

    pw, pb = [], []
    for l, (w, b) in enumerate(zip(weights, biases)):
        dt = mxu_dtype if mxu_dtype is not None else w.dtype
        wp = jnp.zeros((pdims[l], pdims[l + 1]), dt)
        wp = wp.at[: w.shape[0], : w.shape[1]].set(w.astype(dt))
        bp = jnp.zeros((1, pdims[l + 1]), jnp.float32)
        bp = bp.at[0, : b.shape[0]].set(b.astype(jnp.float32))
        pw.append(wp)
        pb.append(bp)

    ln = None
    if ln_params is not None:
        gamma, beta = ln_params
        ln = (
            jnp.zeros((1, pdims[-1]), jnp.float32).at[0, :n_out].set(
                gamma.astype(jnp.float32)),
            jnp.zeros((1, pdims[-1]), jnp.float32).at[0, :n_out].set(
                beta.astype(jnp.float32)),
        )
    return PreparedMLP(tuple(pw), tuple(pb), ln, pdims, n_in, n_out)


# ----------------------------------------------------------------------------
# Forward
# ----------------------------------------------------------------------------
def _fused_call(x_in, prep, bb, B_pad, out_dtype, eps, vmem_limit, buffered_params):
    pdims = prep.pdims
    params = prep.flat_params

    if buffered_params:
        # Constant-index resident params: single buffer (never re-fetched).
        param_specs = [
            pl.BlockSpec(p.shape, lambda i: (0, 0), pipeline_mode=pl.Buffered(1))
            for p in params
        ]
    else:
        param_specs = [pl.BlockSpec(p.shape, lambda i: (0, 0)) for p in params]

    in_specs = [pl.BlockSpec((bb, pdims[0]), lambda i: (i, 0))] + param_specs
    out_spec = pl.BlockSpec((bb, pdims[-1]), lambda i: (i, 0))

    kernel = functools.partial(
        _mlp_fused_kernel,
        num_linear=prep.num_linear,
        layer_norm=prep.layer_norm,
        n_out_real=prep.n_out,
        eps=eps,
        masked_ln=(pdims[-1] != prep.n_out),
    )

    return pl.pallas_call(
        kernel,
        out_shape=jax.ShapeDtypeStruct((B_pad, pdims[-1]), out_dtype),
        grid=(B_pad // bb,),
        in_specs=in_specs,
        out_specs=out_spec,
        compiler_params=pltpu.CompilerParams(
            dimension_semantics=("parallel",),    # batch tiles shard across v7x TCs
            vmem_limit_bytes=int(vmem_limit),
        ),
    )(x_in, *params)


def _pick_feature_tile(dim, cap=512):
    """Largest multiple-of-128 tile <= cap that divides `dim` (dim % 128 == 0)."""
    for t in (cap, 384, 256, 128):
        if t <= dim and dim % t == 0:
            return t
    return dim


def _tiled_forward(x, prep, out_dtype, eps, limit_cap):
    """Per-layer K/N-tiled path for weight stacks too large to sit in VMEM."""
    B, n_in = x.shape
    pdims = prep.pdims
    tm = min(256, _round_up(B, 32))            # 32: safe sublane tile for bf16 too
    B_pad = _round_up(B, tm)

    if B_pad != B or pdims[0] != n_in:
        h = jnp.zeros((B_pad, pdims[0]), x.dtype).at[:B, :n_in].set(x)
    else:
        h = x

    limit = int(min(limit_cap, 64 << 20))
    nl = prep.num_linear
    for l, (w, b) in enumerate(zip(prep.weights, prep.biases)):
        K, N = w.shape
        relu = l < nl - 1
        last = l == nl - 1
        if last:
            layer_out_dtype = jnp.float32 if prep.layer_norm else out_dtype
        else:
            layer_out_dtype = w.dtype          # keep bf16 between layers if chosen
        tk = _pick_feature_tile(K)
        tn = _pick_feature_tile(N)
        kernel = functools.partial(_linear_kernel, relu=relu)
        h = pl.pallas_call(
            kernel,
            out_shape=jax.ShapeDtypeStruct((B_pad, N), layer_out_dtype),
            grid=(B_pad // tm, N // tn, K // tk),
            in_specs=[
                pl.BlockSpec((tm, tk), lambda i, j, k: (i, k)),
                pl.BlockSpec((tk, tn), lambda i, j, k: (k, j)),
                pl.BlockSpec((1, tn), lambda i, j, k: (0, j)),
            ],
            out_specs=pl.BlockSpec((tm, tn), lambda i, j, k: (i, j)),
            scratch_shapes=[pltpu.VMEM((tm, tn), jnp.float32)],
            compiler_params=pltpu.CompilerParams(
                dimension_semantics=("parallel", "parallel", "arbitrary"),
                vmem_limit_bytes=limit,
            ),
        )(h, w, b)

    if prep.layer_norm:
        gamma, beta = prep.ln
        Npad = pdims[-1]
        kernel = functools.partial(
            _layernorm_kernel, n_real=prep.n_out, eps=eps,
            masked=(Npad != prep.n_out))
        h = pl.pallas_call(
            kernel,
            out_shape=jax.ShapeDtypeStruct((B_pad, Npad), out_dtype),
            grid=(B_pad // tm,),
            in_specs=[
                pl.BlockSpec((tm, Npad), lambda i: (i, 0)),
                pl.BlockSpec((1, Npad), lambda i: (0, 0)),
                pl.BlockSpec((1, Npad), lambda i: (0, 0)),
            ],
            out_specs=pl.BlockSpec((tm, Npad), lambda i: (i, 0)),
            compiler_params=pltpu.CompilerParams(
                dimension_semantics=("parallel",),
                vmem_limit_bytes=limit,
            ),
        )(h, gamma, beta)
    return h, B_pad


def mlp_forward(x, prep, *, block_b=256, eps=1e-5, force_tiled=False):
    """Pallas MLP forward.  x: [B, n_in];  prep: PreparedMLP (padded params)."""
    B, n_in = x.shape
    assert n_in == prep.n_in, (n_in, prep.n_in)
    out_dtype = x.dtype
    pdims = prep.pdims

    budget, limit_cap = _vmem_budget_bytes()
    x_isz = jnp.dtype(x.dtype).itemsize
    out_isz = jnp.dtype(out_dtype).itemsize
    param_bytes = prep.param_bytes

    B8 = _round_up(B, _SUBLANE)
    min_bb = min(128, B8)                      # never shrink below 128 rows

    def est(bb_):
        io = bb_ * pdims[0] * x_isz + bb_ * pdims[-1] * out_isz
        act = bb_ * max(pdims) * 4 * 3         # f32 activation temporaries
        return param_bytes + 2 * io + act      # params single-buffered

    use_fused = (not force_tiled) and est(min_bb) <= budget

    if use_fused:
        bb = max(min_bb, min(_round_up(block_b, _SUBLANE), B8))
        while bb > min_bb and est(bb) > budget:
            bb = max(min_bb, _round_up(bb // 2, _SUBLANE))
        # Ensure >=2 batch tiles when the batch allows it, so the "parallel"
        # axis actually feeds both v7x TensorCores.
        if B8 >= 2 * min_bb and B8 // bb < 2:
            bb = _round_up(_cdiv(B8, 2), _SUBLANE)

        B_pad = _round_up(B, bb)
        if B_pad != B or pdims[0] != n_in:
            x_in = jnp.zeros((B_pad, pdims[0]), x.dtype).at[:B, :n_in].set(x)
        else:
            x_in = x

        vmem_limit = int(min(limit_cap, max(32 << 20, 2 * est(bb))))
        try:
            out_p = _fused_call(x_in, prep, bb, B_pad, out_dtype, eps,
                                vmem_limit, buffered_params=True)
        except Exception:
            # Fallback if this JAX build rejects pl.Buffered(1) resident params.
            fallback_limit = int(min(limit_cap, vmem_limit + param_bytes))
            out_p = _fused_call(x_in, prep, bb, B_pad, out_dtype, eps,
                                fallback_limit, buffered_params=False)
    else:
        # Weight stack too big for VMEM residence: K/N-tiled per-layer kernels.
        out_p, B_pad = _tiled_forward(x, prep, out_dtype, eps, limit_cap)

    if B_pad == B and pdims[-1] == prep.n_out:
        return out_p
    return out_p[:B, :prep.n_out]


# ----------------------------------------------------------------------------
# Init + reference (mirror the PyTorch module)
# ----------------------------------------------------------------------------
def init_mlp_params(key, n_in, n_out, hidden=100, nlayers=2, layer_norm=False):
    """PyTorch-default-style uniform(-1/sqrt(fan_in), 1/sqrt(fan_in)) init.
    Returns weights already in [in, out] layout."""
    dims = [n_in] + [hidden] * (nlayers + 1) + [n_out]
    weights, biases = [], []
    for fan_in, fan_out in zip(dims[:-1], dims[1:]):
        key, kw, kb = jax.random.split(key, 3)
        bound = 1.0 / float(jnp.sqrt(float(fan_in)))
        weights.append(
            jax.random.uniform(kw, (fan_in, fan_out), jnp.float32, -bound, bound))
        biases.append(
            jax.random.uniform(kb, (fan_out,), jnp.float32, -bound, bound))
    ln_params = None
    if layer_norm:
        ln_params = (jnp.ones((n_out,), jnp.float32),
                     jnp.zeros((n_out,), jnp.float32))
    return weights, biases, ln_params


def mlp_reference(x, weights, biases, ln_params=None, eps=1e-5):
    """Plain-JAX reference mirroring the PyTorch forward."""
    h = x
    for i, (w, b) in enumerate(zip(weights, biases)):
        h = h @ w + b
        if i < len(weights) - 1:
            h = jnp.maximum(h, 0.0)
    if ln_params is not None:
        gamma, beta = ln_params
        mean = jnp.mean(h, axis=-1, keepdims=True)
        var = jnp.mean((h - mean) ** 2, axis=-1, keepdims=True)
        h = (h - mean) / jnp.sqrt(var + eps) * gamma + beta
    return h


if __name__ == "__main__":
    # Small shapes consistent with MLP(n_in=16, n_out=8, hidden=32, nlayers=2)
    B, n_in, hidden, n_out, nlayers = 16, 16, 32, 8, 2

    key = jax.random.PRNGKey(0)
    key, kx = jax.random.split(key)
    x = jax.random.normal(kx, (B, n_in), jnp.float32)

    for layer_norm in (False, True):
        weights, biases, ln_params = init_mlp_params(
            key, n_in, n_out, hidden=hidden, nlayers=nlayers, layer_norm=layer_norm)

        prep = prepare_mlp_params(weights, biases, ln_params)           # f32 MXU
        prep_bf16 = prepare_mlp_params(weights, biases, ln_params,
                                       mxu_dtype=jnp.bfloat16)          # bf16 MXU

        # Also exercise a batch that is not a multiple of the tile (padding path).
        for xb in (x, x[:13]):
            ref = mlp_reference(xb, weights, biases, ln_params)

            # Fused resident-weight path (f32 operands).
            out = jax.block_until_ready(mlp_forward(xb, prep))
            assert out.shape == ref.shape
            assert jnp.allclose(out, ref, atol=1e-4, rtol=1e-4), (
                "fused", layer_norm, xb.shape, float(jnp.max(jnp.abs(out - ref))))

            # K/N-tiled fallback path (weights too big for VMEM in real use).
            out_t = jax.block_until_ready(mlp_forward(xb, prep, force_tiled=True))
            assert jnp.allclose(out_t, ref, atol=1e-4, rtol=1e-4), (
                "tiled", layer_norm, xb.shape, float(jnp.max(jnp.abs(out_t - ref))))

            # bf16 MXU path (deliberate precision change -> loose tolerance).
            out_bf = jax.block_until_ready(mlp_forward(xb, prep_bf16))
            assert jnp.allclose(out_bf, ref, atol=1.5e-1, rtol=1.5e-1), (
                "bf16", layer_norm, xb.shape, float(jnp.max(jnp.abs(out_bf - ref))))

    print("KERNEL_OK")
</pallas_src>

<mosaic_0001>
module attributes {stable_mosaic.version = 11 : i64} {
  func.func @_mlp_fused_kernel(%arg0: i32, %arg1: memref<16x128xf32, #tpu.memory_space<vmem>>, %arg2: memref<128x128xf32, #tpu.memory_space<vmem>>, %arg3: memref<1x128xf32, #tpu.memory_space<vmem>>, %arg4: memref<128x128xf32, #tpu.memory_space<vmem>>, %arg5: memref<1x128xf32, #tpu.memory_space<vmem>>, %arg6: memref<128x128xf32, #tpu.memory_space<vmem>>, %arg7: memref<1x128xf32, #tpu.memory_space<vmem>>, %arg8: memref<128x128xf32, #tpu.memory_space<vmem>>, %arg9: memref<1x128xf32, #tpu.memory_space<vmem>>, %arg10: memref<16x128xf32, #tpu.memory_space<vmem>>) attributes {dimension_semantics = [#tpu.dimension_semantics<parallel>], iteration_bounds = array<i64: 1>, scalar_prefetch = 0 : i64, scratch_operands = 0 : i64, tpu.core_type = #tpu.core_type<tc>, window_params = [{transform_indices = @transform_0, window_bounds = array<i64: 16, 128>}, {pipeline_mode = #tpu.pipeline_mode<synchronous>, transform_indices = @transform_1, window_bounds = array<i64: 128, 128>}, {pipeline_mode = #tpu.pipeline_mode<synchronous>, transform_indices = @transform_2, window_bounds = array<i64: 1, 128>}, {pipeline_mode = #tpu.pipeline_mode<synchronous>, transform_indices = @transform_3, window_bounds = array<i64: 128, 128>}, {pipeline_mode = #tpu.pipeline_mode<synchronous>, transform_indices = @transform_4, window_bounds = array<i64: 1, 128>}, {pipeline_mode = #tpu.pipeline_mode<synchronous>, transform_indices = @transform_5, window_bounds = array<i64: 128, 128>}, {pipeline_mode = #tpu.pipeline_mode<synchronous>, transform_indices = @transform_6, window_bounds = array<i64: 1, 128>}, {pipeline_mode = #tpu.pipeline_mode<synchronous>, transform_indices = @transform_7, window_bounds = array<i64: 128, 128>}, {pipeline_mode = #tpu.pipeline_mode<synchronous>, transform_indices = @transform_8, window_bounds = array<i64: 1, 128>}, {transform_indices = @transform_9, window_bounds = array<i64: 16, 128>}]} {
    %c0 = arith.constant 0 : index
    %c0_0 = arith.constant 0 : index
    %0 = vector.load %arg1[%c0, %c0_0] : memref<16x128xf32, #tpu.memory_space<vmem>>, vector<16x128xf32>
    %c0_1 = arith.constant 0 : index
    %c0_2 = arith.constant 0 : index
    %1 = vector.load %arg2[%c0_1, %c0_2] : memref<128x128xf32, #tpu.memory_space<vmem>>, vector<128x128xf32>
    %c0_3 = arith.constant 0 : index
    %c0_4 = arith.constant 0 : index
    %2 = vector.load %arg3[%c0_3, %c0_4] : memref<1x128xf32, #tpu.memory_space<vmem>>, vector<1x128xf32>
    %cst = arith.constant dense<0.000000e+00> : vector<16x128xf32>
    %3 = tpu.matmul %0, %1, %cst {dimension_numbers = #tpu.dot_dimension_numbers<[1], [0], [0], [1], [0, 0, 1, 1], [], []>} : vector<16x128xf32>, vector<128x128xf32>, vector<16x128xf32> -> vector<16x128xf32>
    %4 = vector.broadcast %2 : vector<1x128xf32> to vector<16x128xf32>
    %5 = arith.addf %3, %4 : vector<16x128xf32>
    %cst_5 = arith.constant 0.000000e+00 : f32
    %6 = vector.broadcast %cst_5 : f32 to vector<16x128xf32>
    %7 = arith.maximumf %5, %6 : vector<16x128xf32>
    %c0_6 = arith.constant 0 : index
    %c0_7 = arith.constant 0 : index
    %8 = vector.load %arg4[%c0_6, %c0_7] : memref<128x128xf32, #tpu.memory_space<vmem>>, vector<128x128xf32>
    %c0_8 = arith.constant 0 : index
    %c0_9 = arith.constant 0 : index
    %9 = vector.load %arg5[%c0_8, %c0_9] : memref<1x128xf32, #tpu.memory_space<vmem>>, vector<1x128xf32>
    %cst_10 = arith.constant dense<0.000000e+00> : vector<16x128xf32>
    %10 = tpu.matmul %7, %8, %cst_10 {dimension_numbers = #tpu.dot_dimension_numbers<[1], [0], [0], [1], [0, 0, 1, 1], [], []>} : vector<16x128xf32>, vector<128x128xf32>, vector<16x128xf32> -> vector<16x128xf32>
    %11 = vector.broadcast %9 : vector<1x128xf32> to vector<16x128xf32>
    %12 = arith.addf %10, %11 : vector<16x128xf32>
    %cst_11 = arith.constant 0.000000e+00 : f32
    %13 = vector.broadcast %cst_11 : f32 to vector<16x128xf32>
    %14 = arith.maximumf %12, %13 : vector<16x128xf32>
    %c0_12 = arith.constant 0 : index
    %c0_13 = arith.constant 0 : index
    %15 = vector.load %arg6[%c0_12, %c0_13] : memref<128x128xf32, #tpu.memory_space<vmem>>, vector<128x128xf32>
    %c0_14 = arith.constant 0 : index
    %c0_15 = arith.constant 0 : index
    %16 = vector.load %arg7[%c0_14, %c0_15] : memref<1x128xf32, #tpu.memory_space<vmem>>, vector<1x128xf32>
    %cst_16 = arith.constant dense<0.000000e+00> : vector<16x128xf32>
    %17 = tpu.matmul %14, %15, %cst_16 {dimension_numbers = #tpu.dot_dimension_numbers<[1], [0], [0], [1], [0, 0, 1, 1], [], []>} : vector<16x128xf32>, vector<128x128xf32>, vector<16x128xf32> -> vector<16x128xf32>
    %18 = vector.broadcast %16 : vector<1x128xf32> to vector<16x128xf32>
    %19 = arith.addf %17, %18 : vector<16x128xf32>
    %cst_17 = arith.constant 0.000000e+00 : f32
    %20 = vector.broadcast %cst_17 : f32 to vector<16x128xf32>
    %21 = arith.maximumf %19, %20 : vector<16x128xf32>
    %c0_18 = arith.constant 0 : index
    %c0_19 = arith.constant 0 : index
    %22 = vector.load %arg8[%c0_18, %c0_19] : memref<128x128xf32, #tpu.memory_space<vmem>>, vector<128x128xf32>
    %c0_20 = arith.constant 0 : index
    %c0_21 = arith.constant 0 : index
    %23 = vector.load %arg9[%c0_20, %c0_21] : memref<1x128xf32, #tpu.memory_space<vmem>>, vector<1x128xf32>
    %cst_22 = arith.constant dense<0.000000e+00> : vector<16x128xf32>
    %24 = tpu.matmul %21, %22, %cst_22 {dimension_numbers = #tpu.dot_dimension_numbers<[1], [0], [0], [1], [0, 0, 1, 1], [], []>} : vector<16x128xf32>, vector<128x128xf32>, vector<16x128xf32> -> vector<16x128xf32>
    %25 = vector.broadcast %23 : vector<1x128xf32> to vector<16x128xf32>
    %26 = arith.addf %24, %25 : vector<16x128xf32>
    %c0_23 = arith.constant 0 : index
    %c0_24 = arith.constant 0 : index
    %27 = vector.load %arg10[%c0_23, %c0_24] : memref<16x128xf32, #tpu.memory_space<vmem>>, vector<16x128xf32>
    tpu.vector_store %arg10[%c0_23, %c0_24], %26 {strides = array<i32>} : memref<16x128xf32, #tpu.memory_space<vmem>>, vector<16x128xf32>,
    return
  }
  func.func @transform_0(%arg0: i32) -> (i32, i32) {
    %c0_i32 = arith.constant 0 : i32
    %c0_i32_0 = arith.constant 0 : i32
    return %arg0, %c0_i32 : i32, i32
  }
  func.func @transform_1(%arg0: i32) -> (i32, i32) {
    %c0_i32 = arith.constant 0 : i32
    %c0_i32_0 = arith.constant 0 : i32
    %c0_i32_1 = arith.constant 0 : i32
    return %c0_i32, %c0_i32_0 : i32, i32
  }
  func.func @transform_2(%arg0: i32) -> (i32, i32) {
    %c0_i32 = arith.constant 0 : i32
    %c0_i32_0 = arith.constant 0 : i32
    %c0_i32_1 = arith.constant 0 : i32
    return %c0_i32, %c0_i32_0 : i32, i32
  }
  func.func @transform_3(%arg0: i32) -> (i32, i32) {
    %c0_i32 = arith.constant 0 : i32
    %c0_i32_0 = arith.constant 0 : i32
    %c0_i32_1 = arith.constant 0 : i32
    return %c0_i32, %c0_i32_0 : i32, i32
  }
  func.func @transform_4(%arg0: i32) -> (i32, i32) {
    %c0_i32 = arith.constant 0 : i32
    %c0_i32_0 = arith.constant 0 : i32
    %c0_i32_1 = arith.constant 0 : i32
    return %c0_i32, %c0_i32_0 : i32, i32
  }
  func.func @transform_5(%arg0: i32) -> (i32, i32) {
    %c0_i32 = arith.constant 0 : i32
    %c0_i32_0 = arith.constant 0 : i32
    %c0_i32_1 = arith.constant 0 : i32
    return %c0_i32, %c0_i32_0 : i32, i32
  }
  func.func @transform_6(%arg0: i32) -> (i32, i32) {
    %c0_i32 = arith.constant 0 : i32
    %c0_i32_0 = arith.constant 0 : i32
    %c0_i32_1 = arith.constant 0 : i32
    return %c0_i32, %c0_i32_0 : i32, i32
  }
  func.func @transform_7(%arg0: i32) -> (i32, i32) {
    %c0_i32 = arith.constant 0 : i32
    %c0_i32_0 = arith.constant 0 : i32
    %c0_i32_1 = arith.constant 0 : i32
    return %c0_i32, %c0_i32_0 : i32, i32
  }
  func.func @transform_8(%arg0: i32) -> (i32, i32) {
    %c0_i32 = arith.constant 0 : i32
    %c0_i32_0 = arith.constant 0 : i32
    %c0_i32_1 = arith.constant 0 : i32
    return %c0_i32, %c0_i32_0 : i32, i32
  }
  func.func @transform_9(%arg0: i32) -> (i32, i32) {
    %c0_i32 = arith.constant 0 : i32
    %c0_i32_0 = arith.constant 0 : i32
    return %arg0, %c0_i32 : i32, i32
  }
}

module attributes {stable_mosaic.version = 11 : i64} {
  func.func @_mlp_fused_kernel(%arg0: i32, %arg1: memref<16x128xf32, #tpu.memory_space<vmem>>, %arg2: memref<128x128xf32, #tpu.memory_space<vmem>>, %arg3: memref<1x128xf32, #tpu.memory_space<vmem>>, %arg4: memref<128x128xf32, #tpu.memory_space<vmem>>, %arg5: memref<1x128xf32, #tpu.memory_space<vmem>>, %arg6: memref<128x128xf32, #tpu.memory_space<vmem>>, %arg7: memref<1x128xf32, #tpu.memory_space<vmem>>, %arg8: memref<128x128xf32, #tpu.memory_space<vmem>>, %arg9: memref<1x128xf32, #tpu.memory_space<vmem>>, %arg10: memref<16x128xf32, #tpu.memory_space<vmem>>) attributes {dimension_semantics = [#tpu.dimension_semantics<parallel>], iteration_bounds = array<i64: 1>, scalar_prefetch = 0 : i64, scratch_operands = 0 : i64, tpu.core_type = #tpu.core_type<tc>, window_params = [{transform_indices = @transform_0, window_bounds = array<i64: 16, 128>}, {pipeline_mode = #tpu.pipeline_mode<synchronous>, transform_indices = @transform_1, window_bounds = array<i64: 128, 128>}, {pipeline_mode = #tpu.pipeline_mode<synchronous>, transform_indices = @transform_2, window_bounds = array<i64: 1, 128>}, {pipeline_mode = #tpu.pipeline_mode<synchronous>, transform_indices = @transform_3, window_bounds = array<i64: 128, 128>}, {pipeline_mode = #tpu.pipeline_mode<synchronous>, transform_indices = @transform_4, window_bounds = array<i64: 1, 128>}, {pipeline_mode = #tpu.pipeline_mode<synchronous>, transform_indices = @transform_5, window_bounds = array<i64: 128, 128>}, {pipeline_mode = #tpu.pipeline_mode<synchronous>, transform_indices = @transform_6, window_bounds = array<i64: 1, 128>}, {pipeline_mode = #tpu.pipeline_mode<synchronous>, transform_indices = @transform_7, window_bounds = array<i64: 128, 128>}, {pipeline_mode = #tpu.pipeline_mode<synchronous>, transform_indices = @transform_8, window_bounds = array<i64: 1, 128>}, {transform_indices = @transform_9, window_bounds = array<i64: 16, 128>}]} {
    %c0 = arith.constant 0 : index
    %c0_0 = arith.constant 0 : index
    %0 = vector.load %arg1[%c0, %c0_0] : memref<16x128xf32, #tpu.memory_space<vmem>>, vector<16x128xf32>
    %c0_1 = arith.constant 0 : index
    %c0_2 = arith.constant 0 : index
    %1 = vector.load %arg2[%c0_1, %c0_2] : memref<128x128xf32, #tpu.memory_space<vmem>>, vector<128x128xf32>
    %c0_3 = arith.constant 0 : index
    %c0_4 = arith.constant 0 : index
    %2 = vector.load %arg3[%c0_3, %c0_4] : memref<1x128xf32, #tpu.memory_space<vmem>>, vector<1x128xf32>
    %cst = arith.constant dense<0.000000e+00> : vector<16x128xf32>
    %3 = tpu.matmul %0, %1, %cst {dimension_numbers = #tpu.dot_dimension_numbers<[1], [0], [0], [1], [0, 0, 1, 1], [], []>} : vector<16x128xf32>, vector<128x128xf32>, vector<16x128xf32> -> vector<16x128xf32>
    %4 = vector.broadcast %2 : vector<1x128xf32> to vector<16x128xf32>
    %5 = arith.addf %3, %4 : vector<16x128xf32>
    %cst_5 = arith.constant 0.000000e+00 : f32
    %6 = vector.broadcast %cst_5 : f32 to vector<16x128xf32>
    %7 = arith.maximumf %5, %6 : vector<16x128xf32>
    %c0_6 = arith.constant 0 : index
    %c0_7 = arith.constant 0 : index
    %8 = vector.load %arg4[%c0_6, %c0_7] : memref<128x128xf32, #tpu.memory_space<vmem>>, vector<128x128xf32>
    %c0_8 = arith.constant 0 : index
    %c0_9 = arith.constant 0 : index
    %9 = vector.load %arg5[%c0_8, %c0_9] : memref<1x128xf32, #tpu.memory_space<vmem>>, vector<1x128xf32>
    %cst_10 = arith.constant dense<0.000000e+00> : vector<16x128xf32>
    %10 = tpu.matmul %7, %8, %cst_10 {dimension_numbers = #tpu.dot_dimension_numbers<[1], [0], [0], [1], [0, 0, 1, 1], [], []>} : vector<16x128xf32>, vector<128x128xf32>, vector<16x128xf32> -> vector<16x128xf32>
    %11 = vector.broadcast %9 : vector<1x128xf32> to vector<16x128xf32>
    %12 = arith.addf %10, %11 : vector<16x128xf32>
    %cst_11 = arith.constant 0.000000e+00 : f32
    %13 = vector.broadcast %cst_11 : f32 to vector<16x128xf32>
    %14 = arith.maximumf %12, %13 : vector<16x128xf32>
    %c0_12 = arith.constant 0 : index
    %c0_13 = arith.constant 0 : index
    %15 = vector.load %arg6[%c0_12, %c0_13] : memref<128x128xf32, #tpu.memory_space<vmem>>, vector<128x128xf32>
    %c0_14 = arith.constant 0 : index
    %c0_15 = arith.constant 0 : index
    %16 = vector.load %arg7[%c0_14, %c0_15] : memref<1x128xf32, #tpu.memory_space<vmem>>, vector<1x128xf32>
    %cst_16 = arith.constant dense<0.000000e+00> : vector<16x128xf32>
    %17 = tpu.matmul %14, %15, %cst_16 {dimension_numbers = #tpu.dot_dimension_numbers<[1], [0], [0], [1], [0, 0, 1, 1], [], []>} : vector<16x128xf32>, vector<128x128xf32>, vector<16x128xf32> -> vector<16x128xf32>
    %18 = vector.broadcast %16 : vector<1x128xf32> to vector<16x128xf32>
    %19 = arith.addf %17, %18 : vector<16x128xf32>
    %cst_17 = arith.constant 0.000000e+00 : f32
    %20 = vector.broadcast %cst_17 : f32 to vector<16x128xf32>
    %21 = arith.maximumf %19, %20 : vector<16x128xf32>
    %c0_18 = arith.constant 0 : index
    %c0_19 = arith.constant 0 : index
    %22 = vector.load %arg8[%c0_18, %c0_19] : memref<128x128xf32, #tpu.memory_space<vmem>>, vector<128x128xf32>
    %c0_20 = arith.constant 0 : index
    %c0_21 = arith.constant 0 : index
    %23 = vector.load %arg9[%c0_20, %c0_21] : memref<1x128xf32, #tpu.memory_space<vmem>>, vector<1x128xf32>
    %cst_22 = arith.constant dense<0.000000e+00> : vector<16x128xf32>
    %24 = tpu.matmul %21, %22, %cst_22 {dimension_numbers = #tpu.dot_dimension_numbers<[1], [0], [0], [1], [0, 0, 1, 1], [], []>} : vector<16x128xf32>, vector<128x128xf32>, vector<16x128xf32> -> vector<16x128xf32>
    %25 = vector.broadcast %23 : vector<1x128xf32> to vector<16x128xf32>
    %26 = arith.addf %24, %25 : vector<16x128xf32>
    %c0_23 = arith.constant 0 : index
    %c0_24 = arith.constant 0 : index
    %27 = vector.load %arg10[%c0_23, %c0_24] : memref<16x128xf32, #tpu.memory_space<vmem>>, vector<16x128xf32>
    tpu.vector_store %arg10[%c0_23, %c0_24], %26 {strides = array<i32>} : memref<16x128xf32, #tpu.memory_space<vmem>>, vector<16x128xf32>,
    return
  }
  func.func @transform_0(%arg0: i32) -> (i32, i32) {
    %c0_i32 = arith.constant 0 : i32
    %c0_i32_0 = arith.constant 0 : i32
    return %arg0, %c0_i32 : i32, i32
  }
  func.func @transform_1(%arg0: i32) -> (i32, i32) {
    %c0_i32 = arith.constant 0 : i32
    %c0_i32_0 = arith.constant 0 : i32
    %c0_i32_1 = arith.constant 0 : i32
    return %c0_i32, %c0_i32_0 : i32, i32
  }
  func.func @transform_2(%arg0: i32) -> (i32, i32) {
    %c0_i32 = arith.constant 0 : i32
    %c0_i32_0 = arith.constant 0 : i32
    %c0_i32_1 = arith.constant 0 : i32
    return %c0_i32, %c0_i32_0 : i32, i32
  }
  func.func @transform_3(%arg0: i32) -> (i32, i32) {
    %c0_i32 = arith.constant 0 : i32
    %c0_i32_0 = arith.constant 0 : i32
    %c0_i32_1 = arith.constant 0 : i32
    return %c0_i32, %c0_i32_0 : i32, i32
  }
  func.func @transform_4(%arg0: i32) -> (i32, i32) {
    %c0_i32 = arith.constant 0 : i32
    %c0_i32_0 = arith.constant 0 : i32
    %c0_i32_1 = arith.constant 0 : i32
    return %c0_i32, %c0_i32_0 : i32, i32
  }
  func.func @transform_5(%arg0: i32) -> (i32, i32) {
    %c0_i32 = arith.constant 0 : i32
    %c0_i32_0 = arith.constant 0 : i32
    %c0_i32_1 = arith.constant 0 : i32
    return %c0_i32, %c0_i32_0 : i32, i32
  }
  func.func @transform_6(%arg0: i32) -> (i32, i32) {
    %c0_i32 = arith.constant 0 : i32
    %c0_i32_0 = arith.constant 0 : i32
    %c0_i32_1 = arith.constant 0 : i32
    return %c0_i32, %c0_i32_0 : i32, i32
  }
  func.func @transform_7(%arg0: i32) -> (i32, i32) {
    %c0_i32 = arith.constant 0 : i32
    %c0_i32_0 = arith.constant 0 : i32
    %c0_i32_1 = arith.constant 0 : i32
    return %c0_i32, %c0_i32_0 : i32, i32
  }
  func.func @transform_8(%arg0: i32) -> (i32, i32) {
    %c0_i32 = arith.constant 0 : i32
    %c0_i32_0 = arith.constant 0 : i32
    %c0_i32_1 = arith.constant 0 : i32
    return %c0_i32, %c0_i32_0 : i32, i32
  }
  func.func @transform_9(%arg0: i32) -> (i32, i32) {
    %c0_i32 = arith.constant 0 : i32
    %c0_i32_0 = arith.constant 0 : i32
    return %arg0, %c0_i32 : i32, i32
  }
}

</mosaic_0001>

<llo_original>
// kernel: tpu_custom_call.1
$region0: #{tpu_custom_call.1}
  #allocation0 [shape = 'u32[]', space=smem, size = 0x4, offset = 0x4, fixed_abs, tag = 'smem constant byte address 0x4 - core index']
  #allocation1 [shape = 'u32[72,128]{1,0:T(1,128)}', space=vmem, size = 0x9000, scoped, tag = 'internal scratch']
  %s0 = inlined_call_operand.hbm [shape: f32[16,128], index: 0, kind: input, shape index: {}]
  %s1 = inlined_call_operand.hbm [shape: f32[128,128], index: 1, kind: input, shape index: {}]
  %s2 = inlined_call_operand.vmem [shape: f32[1,128], index: 2, kind: input, shape index: {}]
  %s3 = inlined_call_operand.hbm [shape: f32[128,128], index: 3, kind: input, shape index: {}]
  %s4 = inlined_call_operand.vmem [shape: f32[1,128], index: 4, kind: input, shape index: {}]
  %s5 = inlined_call_operand.hbm [shape: f32[128,128], index: 5, kind: input, shape index: {}]
  %s6 = inlined_call_operand.vmem [shape: f32[1,128], index: 6, kind: input, shape index: {}]
  %s7 = inlined_call_operand.hbm [shape: f32[128,128], index: 7, kind: input, shape index: {}]
  %s8 = inlined_call_operand.vmem [shape: f32[1,128], index: 8, kind: input, shape index: {}]
  %s9 = inlined_call_operand.hbm [shape: f32[16,128], index: 9, kind: output, shape index: {}]
  %s10 = sld [smem:[#allocation0]]
  $region66: #{tpu_custom_call.1} parent=0
    _
  %s12 = ssub.s32 1, %s10
  %s13 = scalar_select 0, %s12, %s10
  $region1: #{tpu_custom_call.1} parent=0
    #allocation2 [shape = 'u8[8192]{0}', space=vmem, size = 0x2000, scoped, tag = 'input window, operand 0, single buffered']
    #allocation3 [shape = 's32[1]{0}', space=sflag, size = 0x4, scoped, tag = 'scoped memory for tpu_custom_call.1']
    #allocation4 [shape = 's32[1]{0}', space=sflag, size = 0x4, scoped, tag = 'scoped memory for tpu_custom_call.1']
    #allocation5 [shape = 'u8[65536]{0}', space=vmem, size = 0x10000, scoped, tag = 'input window, operand 1, single buffered']
    #allocation6 [shape = 's32[1]{0}', space=sflag, size = 0x4, scoped, tag = 'scoped memory for tpu_custom_call.1']
    #allocation7 [shape = 'u8[65536]{0}', space=vmem, size = 0x10000, scoped, tag = 'input window, operand 3, single buffered']
    #allocation8 [shape = 'u8[65536]{0}', space=vmem, size = 0x10000, scoped, tag = 'input window, operand 5, single buffered']
    #allocation9 [shape = 's32[1]{0}', space=sflag, size = 0x4, scoped, tag = 'scoped memory for tpu_custom_call.1']
    #allocation10 [shape = 'u8[65536]{0}', space=vmem, size = 0x10000, scoped, tag = 'input window, operand 7, single buffered']
    #allocation11 [shape = 'u8[8192]{0}', space=vmem, size = 0x2000, scoped, tag = 'output window, operand 0, single buffered']
    %14 = vsyncpa [#allocation3], 0
    %15 = vsyncpa [#allocation6], 0
    %16 = vsyncpa [#allocation9], 0
    %17 = vsyncpa [#allocation4], 0
    // Predicated region
    $region2: #{tpu_custom_call.1} parent=1 // pred_check
      _
    $region3: #{tpu_custom_call.1} parent=1 // pred_check_branch
      %19 = sbr.rel (0) target = $region5
    $region4: #{tpu_custom_call.1} parent=1 // pred_region
      %21 = vsyncadd [#allocation3], 0
      %s22 = sshll.u32 %s0, 4
      %s23 = int_to_ptr.hbm [resolvable:$true] %s22
      %s24 = sshll.u32 [#allocation2], 4
      %s25 = int_to_ptr.vmem [resolvable:$true] %s24
      %30 = dma.hbm_to_vmem [thread:$0]  %s23, 256, %s25, [#allocation3], 128, 128, 8
    $region5: #{tpu_custom_call.1} parent=1 // pred_fallthru
      _
    // Predicated region
    $region6: #{tpu_custom_call.1} parent=1 // pred_check
      _
    $region7: #{tpu_custom_call.1} parent=1 // pred_check_branch
      %32 = sbr.rel (0) target = $region9
    $region8: #{tpu_custom_call.1} parent=1 // pred_region
      %34 = vsyncadd [#allocation6], 0
      %s35 = sshll.u32 %s1, 4
      %s36 = int_to_ptr.hbm [resolvable:$true] %s35
      %s37 = sshll.u32 [#allocation5], 4
      %s38 = int_to_ptr.vmem [resolvable:$true] %s37
      %43 = dma.hbm_to_vmem [thread:$0]  %s36, 2048, %s38, [#allocation6], 128, 128, 8
    $region9: #{tpu_custom_call.1} parent=1 // pred_fallthru
      _
    // Predicated region
    $region10: #{tpu_custom_call.1} parent=1 // pred_check
      _
    $region11: #{tpu_custom_call.1} parent=1 // pred_check_branch
      %45 = sbr.rel (0) target = $region13
    $region12: #{tpu_custom_call.1} parent=1 // pred_region
      _
    $region13: #{tpu_custom_call.1} parent=1 // pred_fallthru
      _
    // Predicated region
    $region14: #{tpu_custom_call.1} parent=1 // pred_check
      _
    $region15: #{tpu_custom_call.1} parent=1 // pred_check_branch
      %47 = sbr.rel (0) target = $region17
    $region16: #{tpu_custom_call.1} parent=1 // pred_region
      %49 = vsyncadd [#allocation6], 0
      %s50 = sshll.u32 %s3, 4
      %s51 = int_to_ptr.hbm [resolvable:$true] %s50
      %s52 = sshll.u32 [#allocation7], 4
      %s53 = int_to_ptr.vmem [resolvable:$true] %s52
      %58 = dma.hbm_to_vmem [thread:$0]  %s51, 2048, %s53, [#allocation6], 128, 128, 8
    $region17: #{tpu_custom_call.1} parent=1 // pred_fallthru
      _
    // Predicated region
    $region18: #{tpu_custom_call.1} parent=1 // pred_check
      _
    $region19: #{tpu_custom_call.1} parent=1 // pred_check_branch
      %60 = sbr.rel (0) target = $region21
    $region20: #{tpu_custom_call.1} parent=1 // pred_region
      _
    $region21: #{tpu_custom_call.1} parent=1 // pred_fallthru
      _
    // Predicated region
    $region22: #{tpu_custom_call.1} parent=1 // pred_check
      _
    $region23: #{tpu_custom_call.1} parent=1 // pred_check_branch
      %62 = sbr.rel (0) target = $region25
    $region24: #{tpu_custom_call.1} parent=1 // pred_region
      %64 = vsyncadd [#allocation9], 0
      %s65 = sshll.u32 %s5, 4
      %s66 = int_to_ptr.hbm [resolvable:$true] %s65
      %s67 = sshll.u32 [#allocation8], 4
      %s68 = int_to_ptr.vmem [resolvable:$true] %s67
      %73 = dma.hbm_to_vmem [thread:$0]  %s66, 2048, %s68, [#allocation9], 128, 128, 8
    $region25: #{tpu_custom_call.1} parent=1 // pred_fallthru
      _
    // Predicated region
    $region26: #{tpu_custom_call.1} parent=1 // pred_check
      _
    $region27: #{tpu_custom_call.1} parent=1 // pred_check_branch
      %75 = sbr.rel (0) target = $region29
    $region28: #{tpu_custom_call.1} parent=1 // pred_region
      _
    $region29: #{tpu_custom_call.1} parent=1 // pred_fallthru
      _
    // Predicated region
    $region30: #{tpu_custom_call.1} parent=1 // pred_check
      _
    $region31: #{tpu_custom_call.1} parent=1 // pred_check_branch
      %77 = sbr.rel (0) target = $region33
    $region32: #{tpu_custom_call.1} parent=1 // pred_region
      %79 = vsyncadd [#allocation9], 0
      %s80 = sshll.u32 %s7, 4
      %s81 = int_to_ptr.hbm [resolvable:$true] %s80
      %s82 = sshll.u32 [#allocation10], 4
      %s83 = int_to_ptr.vmem [resolvable:$true] %s82
      %88 = dma.hbm_to_vmem [thread:$0]  %s81, 2048, %s83, [#allocation9], 128, 128, 8
    $region33: #{tpu_custom_call.1} parent=1 // pred_fallthru
      _
    // Predicated region
    $region34: #{tpu_custom_call.1} parent=1 // pred_check
      _
    $region35: #{tpu_custom_call.1} parent=1 // pred_check_branch
      %90 = sbr.rel (0) target = $region37
    $region36: #{tpu_custom_call.1} parent=1 // pred_region
      _
    $region37: #{tpu_custom_call.1} parent=1 // pred_fallthru
      _
    // Predicated region
    $region38: #{tpu_custom_call.1} parent=1 // pred_check
      _
    $region39: #{tpu_custom_call.1} parent=1 // pred_check_branch
      %92 = sbr.rel (0) target = $region41
    $region40: #{tpu_custom_call.1} parent=1 // pred_region
      %94 = dma.done [#allocation3], 256
    $region41: #{tpu_custom_call.1} parent=1 // pred_fallthru
      _
    // Predicated region
    $region42: #{tpu_custom_call.1} parent=1 // pred_check
      _
    $region43: #{tpu_custom_call.1} parent=1 // pred_check_branch
      %96 = sbr.rel (0) target = $region45
    $region44: #{tpu_custom_call.1} parent=1 // pred_region
      %98 = dma.done [#allocation6], 2048
    $region45: #{tpu_custom_call.1} parent=1 // pred_fallthru
      _
    // Predicated region
    $region46: #{tpu_custom_call.1} parent=1 // pred_check
      _
    $region47: #{tpu_custom_call.1} parent=1 // pred_check_branch
      %100 = sbr.rel (0) target = $region49
    $region48: #{tpu_custom_call.1} parent=1 // pred_region
      %102 = dma.done [#allocation6], 2048
    $region49: #{tpu_custom_call.1} parent=1 // pred_fallthru
      _
    // Predicated region
    $region50: #{tpu_custom_call.1} parent=1 // pred_check
      _
    $region51: #{tpu_custom_call.1} parent=1 // pred_check_branch
      %104 = sbr.rel (0) target = $region53
    $region52: #{tpu_custom_call.1} parent=1 // pred_region
      %106 = dma.done [#allocation9], 2048
    $region53: #{tpu_custom_call.1} parent=1 // pred_fallthru
      _
    // Predicated region
    $region54: #{tpu_custom_call.1} parent=1 // pred_check
      _
    $region55: #{tpu_custom_call.1} parent=1 // pred_check_branch
      %108 = sbr.rel (0) target = $region57
    $region56: #{tpu_custom_call.1} parent=1 // pred_region
      %110 = dma.done [#allocation9], 2048
    $region57: #{tpu_custom_call.1} parent=1 // pred_fallthru
      _
    %v111 = vld [vmem:[#allocation2] sm:$0xff]
    %v112 = vld [vmem:[#allocation2 + $0x8] sm:$0xff]
    %v113 = vld [vmem:[#allocation5] sm:$0xff]
    %v114 = vld [vmem:[#allocation5 + $0x8] sm:$0xff]
    %v115 = vld [vmem:[#allocation5 + $0x10] sm:$0xff]
    %v116 = vld [vmem:[#allocation5 + $0x18] sm:$0xff]
    %v117 = vld [vmem:[#allocation5 + $0x20] sm:$0xff]
    %v118 = vld [vmem:[#allocation5 + $0x28] sm:$0xff]
    %v119 = vld [vmem:[#allocation5 + $0x30] sm:$0xff]
    %v120 = vld [vmem:[#allocation5 + $0x38] sm:$0xff]
    %v121 = vld [vmem:[#allocation5 + $0x40] sm:$0xff]
    %v122 = vld [vmem:[#allocation5 + $0x48] sm:$0xff]
    %v123 = vld [vmem:[#allocation5 + $0x50] sm:$0xff]
    %v124 = vld [vmem:[#allocation5 + $0x58] sm:$0xff]
    %v125 = vld [vmem:[#allocation5 + $0x60] sm:$0xff]
    %v126 = vld [vmem:[#allocation5 + $0x68] sm:$0xff]
    %v127 = vld [vmem:[#allocation5 + $0x70] sm:$0xff]
    %v128 = vld [vmem:[#allocation5 + $0x78] sm:$0xff]
    %v129 = vld [vmem:[%s2] sm:$0x1]
    %v131 = vperm.slane %v129, 0
    %133 = vmatpush.msra.mxu0 %v128
    %134 = vmatpush.msra.mxu0 %v127
    %135 = vmatpush.msra.mxu0 %v126
    %136 = vmatpush.msra.mxu0 %v125
    %137 = vmatpush.msra.mxu0 %v124
    %138 = vmatpush.msra.mxu0 %v123
    %139 = vmatpush.msra.mxu0 %v122
    %140 = vmatpush.msra.mxu0 %v121
    %141 = vmatpush.msra.mxu0 %v120
    %142 = vmatpush.msra.mxu0 %v119
    %143 = vmatpush.msra.mxu0 %v118
    %144 = vmatpush.msra.mxu0 %v117
    %145 = vmatpush.msra.mxu0 %v116
    %146 = vmatpush.msra.mxu0 %v115
    %147 = vmatpush.msra.mxu0 %v114
    %148 = vmatpush.msra.mxu0 %v113
    %149 = vmatmul.f32.gmra.mxu0 %v111
    %v150 = vpop.f32.mrf.mxu0
    %v151 = vadd.f32 %v131, %v150
    %152 = vmatmul.f32.gmra.mxu0 %v112
    %v153 = vpop.f32.mrf.mxu0
    %v154 = vadd.f32 %v131, %v153
    %155 = vdwg.mxu0
    %v156 = vmax.f32 %v151, 0.0
    %v157 = vmax.f32 %v154, 0.0
    %v158 = vld [vmem:[#allocation7] sm:$0xff]
    %v159 = vld [vmem:[#allocation7 + $0x8] sm:$0xff]
    %v160 = vld [vmem:[#allocation7 + $0x10] sm:$0xff]
    %v161 = vld [vmem:[#allocation7 + $0x18] sm:$0xff]
    %v162 = vld [vmem:[#allocation7 + $0x20] sm:$0xff]
    %v163 = vld [vmem:[#allocation7 + $0x28] sm:$0xff]
    %v164 = vld [vmem:[#allocation7 + $0x30] sm:$0xff]
    %v165 = vld [vmem:[#allocation7 + $0x38] sm:$0xff]
    %v166 = vld [vmem:[#allocation7 + $0x40] sm:$0xff]
    %v167 = vld [vmem:[#allocation7 + $0x48] sm:$0xff]
    %v168 = vld [vmem:[#allocation7 + $0x50] sm:$0xff]
    %v169 = vld [vmem:[#allocation7 + $0x58] sm:$0xff]
    %v170 = vld [vmem:[#allocation7 + $0x60] sm:$0xff]
    %v171 = vld [vmem:[#allocation7 + $0x68] sm:$0xff]
    %v172 = vld [vmem:[#allocation7 + $0x70] sm:$0xff]
    %v173 = vld [vmem:[#allocation7 + $0x78] sm:$0xff]
    %v174 = vld [vmem:[%s4] sm:$0x1]
    %v176 = vperm.slane %v174, 0
    %178 = vmatpush.msra.mxu0 %v173
    %179 = vmatpush.msra.mxu0 %v172
    %180 = vmatpush.msra.mxu0 %v171
    %181 = vmatpush.msra.mxu0 %v170
    %182 = vmatpush.msra.mxu0 %v169
    %183 = vmatpush.msra.mxu0 %v168
    %184 = vmatpush.msra.mxu0 %v167
    %185 = vmatpush.msra.mxu0 %v166
    %186 = vmatpush.msra.mxu0 %v165
    %187 = vmatpush.msra.mxu0 %v164
    %188 = vmatpush.msra.mxu0 %v163
    %189 = vmatpush.msra.mxu0 %v162
    %190 = vmatpush.msra.mxu0 %v161
    %191 = vmatpush.msra.mxu0 %v160
    %192 = vmatpush.msra.mxu0 %v159
    %193 = vmatpush.msra.mxu0 %v158
    %194 = vmatmul.f32.gmra.mxu0 %v156
    %v195 = vpop.f32.mrf.mxu0
    %v196 = vadd.f32 %v176, %v195
    %197 = vmatmul.f32.gmra.mxu0 %v157
    %v198 = vpop.f32.mrf.mxu0
    %v199 = vadd.f32 %v176, %v198
    %200 = vdwg.mxu0
    %v201 = vmax.f32 %v196, 0.0
    %v202 = vmax.f32 %v199, 0.0
    %v203 = vld [vmem:[#allocation8] sm:$0xff]
    %v204 = vld [vmem:[#allocation8 + $0x8] sm:$0xff]
    %v205 = vld [vmem:[#allocation8 + $0x10] sm:$0xff]
    %v206 = vld [vmem:[#allocation8 + $0x18] sm:$0xff]
    %v207 = vld [vmem:[#allocation8 + $0x20] sm:$0xff]
    %v208 = vld [vmem:[#allocation8 + $0x28] sm:$0xff]
    %v209 = vld [vmem:[#allocation8 + $0x30] sm:$0xff]
    %v210 = vld [vmem:[#allocation8 + $0x38] sm:$0xff]
    %v211 = vld [vmem:[#allocation8 + $0x40] sm:$0xff]
    %v212 = vld [vmem:[#allocation8 + $0x48] sm:$0xff]
    %v213 = vld [vmem:[#allocation8 + $0x50] sm:$0xff]
    %v214 = vld [vmem:[#allocation8 + $0x58] sm:$0xff]
    %v215 = vld [vmem:[#allocation8 + $0x60] sm:$0xff]
    %v216 = vld [vmem:[#allocation8 + $0x68] sm:$0xff]
    %v217 = vld [vmem:[#allocation8 + $0x70] sm:$0xff]
    %v218 = vld [vmem:[#allocation8 + $0x78] sm:$0xff]
    %v219 = vld [vmem:[%s6] sm:$0x1]
    %v221 = vperm.slane %v219, 0
    %223 = vmatpush.msra.mxu0 %v218
    %224 = vmatpush.msra.mxu0 %v217
    %225 = vmatpush.msra.mxu0 %v216
    %226 = vmatpush.msra.mxu0 %v215
    %227 = vmatpush.msra.mxu0 %v214
    %228 = vmatpush.msra.mxu0 %v213
    %229 = vmatpush.msra.mxu0 %v212
    %230 = vmatpush.msra.mxu0 %v211
    %231 = vmatpush.msra.mxu0 %v210
    %232 = vmatpush.msra.mxu0 %v209
    %233 = vmatpush.msra.mxu0 %v208
    %234 = vmatpush.msra.mxu0 %v207
    %235 = vmatpush.msra.mxu0 %v206
    %236 = vmatpush.msra.mxu0 %v205
    %237 = vmatpush.msra.mxu0 %v204
    %238 = vmatpush.msra.mxu0 %v203
    %239 = vmatmul.f32.gmra.mxu0 %v201
    %v240 = vpop.f32.mrf.mxu0
    %v241 = vadd.f32 %v221, %v240
    %242 = vmatmul.f32.gmra.mxu0 %v202
    %v243 = vpop.f32.mrf.mxu0
    %v244 = vadd.f32 %v221, %v243
    %245 = vdwg.mxu0
    %v246 = vmax.f32 %v241, 0.0
    %v247 = vmax.f32 %v244, 0.0
    %v248 = vld [vmem:[#allocation10] sm:$0xff]
    %v249 = vld [vmem:[#allocation10 + $0x8] sm:$0xff]
    %v250 = vld [vmem:[#allocation10 + $0x10] sm:$0xff]
    %v251 = vld [vmem:[#allocation10 + $0x18] sm:$0xff]
    %v252 = vld [vmem:[#allocation10 + $0x20] sm:$0xff]
    %v253 = vld [vmem:[#allocation10 + $0x28] sm:$0xff]
    %v254 = vld [vmem:[#allocation10 + $0x30] sm:$0xff]
    %v255 = vld [vmem:[#allocation10 + $0x38] sm:$0xff]
    %v256 = vld [vmem:[#allocation10 + $0x40] sm:$0xff]
    %v257 = vld [vmem:[#allocation10 + $0x48] sm:$0xff]
    %v258 = vld [vmem:[#allocation10 + $0x50] sm:$0xff]
    %v259 = vld [vmem:[#allocation10 + $0x58] sm:$0xff]
    %v260 = vld [vmem:[#allocation10 + $0x60] sm:$0xff]
    %v261 = vld [vmem:[#allocation10 + $0x68] sm:$0xff]
    %v262 = vld [vmem:[#allocation10 + $0x70] sm:$0xff]
    %v263 = vld [vmem:[#allocation10 + $0x78] sm:$0xff]
    %v264 = vld [vmem:[%s8] sm:$0x1]
    %v266 = vperm.slane %v264, 0
    %268 = vmatpush.msra.mxu0 %v263
    %269 = vmatpush.msra.mxu0 %v262
    %270 = vmatpush.msra.mxu0 %v261
    %271 = vmatpush.msra.mxu0 %v260
    %272 = vmatpush.msra.mxu0 %v259
    %273 = vmatpush.msra.mxu0 %v258
    %274 = vmatpush.msra.mxu0 %v257
    %275 = vmatpush.msra.mxu0 %v256
    %276 = vmatpush.msra.mxu0 %v255
    %277 = vmatpush.msra.mxu0 %v254
    %278 = vmatpush.msra.mxu0 %v253
    %279 = vmatpush.msra.mxu0 %v252
    %280 = vmatpush.msra.mxu0 %v251
    %281 = vmatpush.msra.mxu0 %v250
    %282 = vmatpush.msra.mxu0 %v249
    %283 = vmatpush.msra.mxu0 %v248
    %284 = vmatmul.f32.gmra.mxu0 %v246
    %v285 = vpop.f32.mrf.mxu0
    %v286 = vadd.f32 %v266, %v285
    %287 = vmatmul.f32.gmra.mxu0 %v247
    %v288 = vpop.f32.mrf.mxu0
    %v289 = vadd.f32 %v266, %v288
    %290 = vdwg.mxu0
    %291 = vst [vmem:[#allocation11] sm:$0xff] %v286
    %292 = vst [vmem:[#allocation11 + $0x8] sm:$0xff] %v289
    // Predicated region
    $region58: #{tpu_custom_call.1} parent=1 // pred_check
      _
    $region59: #{tpu_custom_call.1} parent=1 // pred_check_branch
      %294 = sbr.rel (0) target = $region61
    $region60: #{tpu_custom_call.1} parent=1 // pred_region
      %296 = vsyncadd [#allocation4], 0
      %s297 = sshll.u32 [#allocation11], 4
      %s298 = int_to_ptr.vmem [resolvable:$true] %s297
      %s299 = sshll.u32 %s9, 4
      %s300 = int_to_ptr.hbm [resolvable:$true] %s299
      %305 = dma.vmem_to_hbm [thread:$0]  %s298, 256, %s300, [#allocation4], 128, 128, 8
    $region61: #{tpu_custom_call.1} parent=1 // pred_fallthru
      _
    // Predicated region
    $region62: #{tpu_custom_call.1} parent=1 // pred_check
      _
    $region63: #{tpu_custom_call.1} parent=1 // pred_check_branch
      %307 = sbr.rel (0) target = $region65
    $region64: #{tpu_custom_call.1} parent=1 // pred_region
      %309 = dma.done [#allocation4], 256
    $region65: #{tpu_custom_call.1} parent=1 // pred_fallthru
      _
    %310 = vsyncpa [#allocation3], 1
    %311 = vsyncpa [#allocation6], 1
    %312 = vsyncpa [#allocation9], 1
    %313 = vsyncpa [#allocation4], 1

// kernel: tpu_custom_call.1
$region0: #{tpu_custom_call.1}
  #allocation0 [shape = 'u32[]', space=smem, size = 0x4, offset = 0x4, fixed_abs, tag = 'smem constant byte address 0x4 - core index']
  #allocation1 [shape = 'u32[72,128]{1,0:T(1,128)}', space=vmem, size = 0x9000, scoped, tag = 'internal scratch']
  %s0 = inlined_call_operand.hbm [shape: f32[16,128], index: 0, kind: input, shape index: {}]
  %s1 = inlined_call_operand.hbm [shape: f32[128,128], index: 1, kind: input, shape index: {}]
  %s2 = inlined_call_operand.vmem [shape: f32[1,128], index: 2, kind: input, shape index: {}]
  %s3 = inlined_call_operand.hbm [shape: f32[128,128], index: 3, kind: input, shape index: {}]
  %s4 = inlined_call_operand.vmem [shape: f32[1,128], index: 4, kind: input, shape index: {}]
  %s5 = inlined_call_operand.hbm [shape: f32[128,128], index: 5, kind: input, shape index: {}]
  %s6 = inlined_call_operand.vmem [shape: f32[1,128], index: 6, kind: input, shape index: {}]
  %s7 = inlined_call_operand.hbm [shape: f32[128,128], index: 7, kind: input, shape index: {}]
  %s8 = inlined_call_operand.vmem [shape: f32[1,128], index: 8, kind: input, shape index: {}]
  %s9 = inlined_call_operand.hbm [shape: f32[16,128], index: 9, kind: output, shape index: {}]
  %s10 = sld [smem:[#allocation0]]
  $region66: #{tpu_custom_call.1} parent=0
    _
  %s12 = ssub.s32 1, %s10
  %s13 = scalar_select 0, %s12, %s10
  $region1: #{tpu_custom_call.1} parent=0
    #allocation2 [shape = 'u8[8192]{0}', space=vmem, size = 0x2000, scoped, tag = 'input window, operand 0, single buffered']
    #allocation3 [shape = 's32[1]{0}', space=sflag, size = 0x4, scoped, tag = 'scoped memory for tpu_custom_call.1']
    #allocation4 [shape = 's32[1]{0}', space=sflag, size = 0x4, scoped, tag = 'scoped memory for tpu_custom_call.1']
    #allocation5 [shape = 'u8[65536]{0}', space=vmem, size = 0x10000, scoped, tag = 'input window, operand 1, single buffered']
    #allocation6 [shape = 's32[1]{0}', space=sflag, size = 0x4, scoped, tag = 'scoped memory for tpu_custom_call.1']
    #allocation7 [shape = 'u8[65536]{0}', space=vmem, size = 0x10000, scoped, tag = 'input window, operand 3, single buffered']
    #allocation8 [shape = 'u8[65536]{0}', space=vmem, size = 0x10000, scoped, tag = 'input window, operand 5, single buffered']
    #allocation9 [shape = 's32[1]{0}', space=sflag, size = 0x4, scoped, tag = 'scoped memory for tpu_custom_call.1']
    #allocation10 [shape = 'u8[65536]{0}', space=vmem, size = 0x10000, scoped, tag = 'input window, operand 7, single buffered']
    #allocation11 [shape = 'u8[8192]{0}', space=vmem, size = 0x2000, scoped, tag = 'output window, operand 0, single buffered']
    %14 = vsyncpa [#allocation3], 0
    %15 = vsyncpa [#allocation6], 0
    %16 = vsyncpa [#allocation9], 0
    %17 = vsyncpa [#allocation4], 0
    // Predicated region
    $region2: #{tpu_custom_call.1} parent=1 // pred_check
      _
    $region3: #{tpu_custom_call.1} parent=1 // pred_check_branch
      %19 = sbr.rel (0) target = $region5
    $region4: #{tpu_custom_call.1} parent=1 // pred_region
      %21 = vsyncadd [#allocation3], 0
      %s22 = sshll.u32 %s0, 4
      %s23 = int_to_ptr.hbm [resolvable:$true] %s22
      %s24 = sshll.u32 [#allocation2], 4
      %s25 = int_to_ptr.vmem [resolvable:$true] %s24
      %30 = dma.hbm_to_vmem [thread:$0]  %s23, 256, %s25, [#allocation3], 128, 128, 8
    $region5: #{tpu_custom_call.1} parent=1 // pred_fallthru
      _
    // Predicated region
    $region6: #{tpu_custom_call.1} parent=1 // pred_check
      _
    $region7: #{tpu_custom_call.1} parent=1 // pred_check_branch
      %32 = sbr.rel (0) target = $region9
    $region8: #{tpu_custom_call.1} parent=1 // pred_region
      %34 = vsyncadd [#allocation6], 0
      %s35 = sshll.u32 %s1, 4
      %s36 = int_to_ptr.hbm [resolvable:$true] %s35
      %s37 = sshll.u32 [#allocation5], 4
      %s38 = int_to_ptr.vmem [resolvable:$true] %s37
      %43 = dma.hbm_to_vmem [thread:$0]  %s36, 2048, %s38, [#allocation6], 128, 128, 8
    $region9: #{tpu_custom_call.1} parent=1 // pred_fallthru
      _
    // Predicated region
    $region10: #{tpu_custom_call.1} parent=1 // pred_check
      _
    $region11: #{tpu_custom_call.1} parent=1 // pred_check_branch
      %45 = sbr.rel (0) target = $region13
    $region12: #{tpu_custom_call.1} parent=1 // pred_region
      _
    $region13: #{tpu_custom_call.1} parent=1 // pred_fallthru
      _
    // Predicated region
    $region14: #{tpu_custom_call.1} parent=1 // pred_check
      _
    $region15: #{tpu_custom_call.1} parent=1 // pred_check_branch
      %47 = sbr.rel (0) target = $region17
    $region16: #{tpu_custom_call.1} parent=1 // pred_region
      %49 = vsyncadd [#allocation6], 0
      %s50 = sshll.u32 %s3, 4
      %s51 = int_to_ptr.hbm [resolvable:$true] %s50
      %s52 = sshll.u32 [#allocation7], 4
      %s53 = int_to_ptr.vmem [resolvable:$true] %s52
      %58 = dma.hbm_to_vmem [thread:$0]  %s51, 2048, %s53, [#allocation6], 128, 128, 8
    $region17: #{tpu_custom_call.1} parent=1 // pred_fallthru
      _
    // Predicated region
    $region18: #{tpu_custom_call.1} parent=1 // pred_check
      _
    $region19: #{tpu_custom_call.1} parent=1 // pred_check_branch
      %60 = sbr.rel (0) target = $region21
    $region20: #{tpu_custom_call.1} parent=1 // pred_region
      _
    $region21: #{tpu_custom_call.1} parent=1 // pred_fallthru
      _
    // Predicated region
    $region22: #{tpu_custom_call.1} parent=1 // pred_check
      _
    $region23: #{tpu_custom_call.1} parent=1 // pred_check_branch
      %62 = sbr.rel (0) target = $region25
    $region24: #{tpu_custom_call.1} parent=1 // pred_region
      %64 = vsyncadd [#allocation9], 0
      %s65 = sshll.u32 %s5, 4
      %s66 = int_to_ptr.hbm [resolvable:$true] %s65
      %s67 = sshll.u32 [#allocation8], 4
      %s68 = int_to_ptr.vmem [resolvable:$true] %s67
      %73 = dma.hbm_to_vmem [thread:$0]  %s66, 2048, %s68, [#allocation9], 128, 128, 8
    $region25: #{tpu_custom_call.1} parent=1 // pred_fallthru
      _
    // Predicated region
    $region26: #{tpu_custom_call.1} parent=1 // pred_check
      _
    $region27: #{tpu_custom_call.1} parent=1 // pred_check_branch
      %75 = sbr.rel (0) target = $region29
    $region28: #{tpu_custom_call.1} parent=1 // pred_region
      _
    $region29: #{tpu_custom_call.1} parent=1 // pred_fallthru
      _
    // Predicated region
    $region30: #{tpu_custom_call.1} parent=1 // pred_check
      _
    $region31: #{tpu_custom_call.1} parent=1 // pred_check_branch
      %77 = sbr.rel (0) target = $region33
    $region32: #{tpu_custom_call.1} parent=1 // pred_region
      %79 = vsyncadd [#allocation9], 0
      %s80 = sshll.u32 %s7, 4
      %s81 = int_to_ptr.hbm [resolvable:$true] %s80
      %s82 = sshll.u32 [#allocation10], 4
      %s83 = int_to_ptr.vmem [resolvable:$true] %s82
      %88 = dma.hbm_to_vmem [thread:$0]  %s81, 2048, %s83, [#allocation9], 128, 128, 8
    $region33: #{tpu_custom_call.1} parent=1 // pred_fallthru
      _
    // Predicated region
    $region34: #{tpu_custom_call.1} parent=1 // pred_check
      _
    $region35: #{tpu_custom_call.1} parent=1 // pred_check_branch
      %90 = sbr.rel (0) target = $region37
    $region36: #{tpu_custom_call.1} parent=1 // pred_region
      _
    $region37: #{tpu_custom_call.1} parent=1 // pred_fallthru
      _
    // Predicated region
    $region38: #{tpu_custom_call.1} parent=1 // pred_check
      _
    $region39: #{tpu_custom_call.1} parent=1 // pred_check_branch
      %92 = sbr.rel (0) target = $region41
    $region40: #{tpu_custom_call.1} parent=1 // pred_region
      %94 = dma.done [#allocation3], 256
    $region41: #{tpu_custom_call.1} parent=1 // pred_fallthru
      _
    // Predicated region
    $region42: #{tpu_custom_call.1} parent=1 // pred_check
      _
    $region43: #{tpu_custom_call.1} parent=1 // pred_check_branch
      %96 = sbr.rel (0) target = $region45
    $region44: #{tpu_custom_call.1} parent=1 // pred_region
      %98 = dma.done [#allocation6], 2048
    $region45: #{tpu_custom_call.1} parent=1 // pred_fallthru
      _
    // Predicated region
    $region46: #{tpu_custom_call.1} parent=1 // pred_check
      _
    $region47: #{tpu_custom_call.1} parent=1 // pred_check_branch
      %100 = sbr.rel (0) target = $region49
    $region48: #{tpu_custom_call.1} parent=1 // pred_region
      %102 = dma.done [#allocation6], 2048
    $region49: #{tpu_custom_call.1} parent=1 // pred_fallthru
      _
    // Predicated region
    $region50: #{tpu_custom_call.1} parent=1 // pred_check
      _
    $region51: #{tpu_custom_call.1} parent=1 // pred_check_branch
      %104 = sbr.rel (0) target = $region53
    $region52: #{tpu_custom_call.1} parent=1 // pred_region
      %106 = dma.done [#allocation9], 2048
    $region53: #{tpu_custom_call.1} parent=1 // pred_fallthru
      _
    // Predicated region
    $region54: #{tpu_custom_call.1} parent=1 // pred_check
      _
    $region55: #{tpu_custom_call.1} parent=1 // pred_check_branch
      %108 = sbr.rel (0) target = $region57
    $region56: #{tpu_custom_call.1} parent=1 // pred_region
      %110 = dma.done [#allocation9], 2048
    $region57: #{tpu_custom_call.1} parent=1 // pred_fallthru
      _
    %v111 = vld [vmem:[#allocation2] sm:$0xff]
    %v112 = vld [vmem:[#allocation2 + $0x8] sm:$0xff]
    %v113 = vld [vmem:[#allocation5] sm:$0xff]
    %v114 = vld [vmem:[#allocation5 + $0x8] sm:$0xff]
    %v115 = vld [vmem:[#allocation5 + $0x10] sm:$0xff]
    %v116 = vld [vmem:[#allocation5 + $0x18] sm:$0xff]
    %v117 = vld [vmem:[#allocation5 + $0x20] sm:$0xff]
    %v118 = vld [vmem:[#allocation5 + $0x28] sm:$0xff]
    %v119 = vld [vmem:[#allocation5 + $0x30] sm:$0xff]
    %v120 = vld [vmem:[#allocation5 + $0x38] sm:$0xff]
    %v121 = vld [vmem:[#allocation5 + $0x40] sm:$0xff]
    %v122 = vld [vmem:[#allocation5 + $0x48] sm:$0xff]
    %v123 = vld [vmem:[#allocation5 + $0x50] sm:$0xff]
    %v124 = vld [vmem:[#allocation5 + $0x58] sm:$0xff]
    %v125 = vld [vmem:[#allocation5 + $0x60] sm:$0xff]
    %v126 = vld [vmem:[#allocation5 + $0x68] sm:$0xff]
    %v127 = vld [vmem:[#allocation5 + $0x70] sm:$0xff]
    %v128 = vld [vmem:[#allocation5 + $0x78] sm:$0xff]
    %v129 = vld [vmem:[%s2] sm:$0x1]
    %v131 = vperm.slane %v129, 0
    %133 = vmatpush.msra.mxu0 %v128
    %134 = vmatpush.msra.mxu0 %v127
    %135 = vmatpush.msra.mxu0 %v126
    %136 = vmatpush.msra.mxu0 %v125
    %137 = vmatpush.msra.mxu0 %v124
    %138 = vmatpush.msra.mxu0 %v123
    %139 = vmatpush.msra.mxu0 %v122
    %140 = vmatpush.msra.mxu0 %v121
    %141 = vmatpush.msra.mxu0 %v120
    %142 = vmatpush.msra.mxu0 %v119
    %143 = vmatpush.msra.mxu0 %v118
    %144 = vmatpush.msra.mxu0 %v117
    %145 = vmatpush.msra.mxu0 %v116
    %146 = vmatpush.msra.mxu0 %v115
    %147 = vmatpush.msra.mxu0 %v114
    %148 = vmatpush.msra.mxu0 %v113
    %149 = vmatmul.f32.gmra.mxu0 %v111
    %v150 = vpop.f32.mrf.mxu0
    %v151 = vadd.f32 %v131, %v150
    %152 = vmatmul.f32.gmra.mxu0 %v112
    %v153 = vpop.f32.mrf.mxu0
    %v154 = vadd.f32 %v131, %v153
    %155 = vdwg.mxu0
    %v156 = vmax.f32 %v151, 0.0
    %v157 = vmax.f32 %v154, 0.0
    %v158 = vld [vmem:[#allocation7] sm:$0xff]
    %v159 = vld [vmem:[#allocation7 + $0x8] sm:$0xff]
    %v160 = vld [vmem:[#allocation7 + $0x10] sm:$0xff]
    %v161 = vld [vmem:[#allocation7 + $0x18] sm:$0xff]
    %v162 = vld [vmem:[#allocation7 + $0x20] sm:$0xff]
    %v163 = vld [vmem:[#allocation7 + $0x28] sm:$0xff]
    %v164 = vld [vmem:[#allocation7 + $0x30] sm:$0xff]
    %v165 = vld [vmem:[#allocation7 + $0x38] sm:$0xff]
    %v166 = vld [vmem:[#allocation7 + $0x40] sm:$0xff]
    %v167 = vld [vmem:[#allocation7 + $0x48] sm:$0xff]
    %v168 = vld [vmem:[#allocation7 + $0x50] sm:$0xff]
    %v169 = vld [vmem:[#allocation7 + $0x58] sm:$0xff]
    %v170 = vld [vmem:[#allocation7 + $0x60] sm:$0xff]
    %v171 = vld [vmem:[#allocation7 + $0x68] sm:$0xff]
    %v172 = vld [vmem:[#allocation7 + $0x70] sm:$0xff]
    %v173 = vld [vmem:[#allocation7 + $0x78] sm:$0xff]
    %v174 = vld [vmem:[%s4] sm:$0x1]
    %v176 = vperm.slane %v174, 0
    %178 = vmatpush.msra.mxu0 %v173
    %179 = vmatpush.msra.mxu0 %v172
    %180 = vmatpush.msra.mxu0 %v171
    %181 = vmatpush.msra.mxu0 %v170
    %182 = vmatpush.msra.mxu0 %v169
    %183 = vmatpush.msra.mxu0 %v168
    %184 = vmatpush.msra.mxu0 %v167
    %185 = vmatpush.msra.mxu0 %v166
    %186 = vmatpush.msra.mxu0 %v165
    %187 = vmatpush.msra.mxu0 %v164
    %188 = vmatpush.msra.mxu0 %v163
    %189 = vmatpush.msra.mxu0 %v162
    %190 = vmatpush.msra.mxu0 %v161
    %191 = vmatpush.msra.mxu0 %v160
    %192 = vmatpush.msra.mxu0 %v159
    %193 = vmatpush.msra.mxu0 %v158
    %194 = vmatmul.f32.gmra.mxu0 %v156
    %v195 = vpop.f32.mrf.mxu0
    %v196 = vadd.f32 %v176, %v195
    %197 = vmatmul.f32.gmra.mxu0 %v157
    %v198 = vpop.f32.mrf.mxu0
    %v199 = vadd.f32 %v176, %v198
    %200 = vdwg.mxu0
    %v201 = vmax.f32 %v196, 0.0
    %v202 = vmax.f32 %v199, 0.0
    %v203 = vld [vmem:[#allocation8] sm:$0xff]
    %v204 = vld [vmem:[#allocation8 + $0x8] sm:$0xff]
    %v205 = vld [vmem:[#allocation8 + $0x10] sm:$0xff]
    %v206 = vld [vmem:[#allocation8 + $0x18] sm:$0xff]
    %v207 = vld [vmem:[#allocation8 + $0x20] sm:$0xff]
    %v208 = vld [vmem:[#allocation8 + $0x28] sm:$0xff]
    %v209 = vld [vmem:[#allocation8 + $0x30] sm:$0xff]
    %v210 = vld [vmem:[#allocation8 + $0x38] sm:$0xff]
    %v211 = vld [vmem:[#allocation8 + $0x40] sm:$0xff]
    %v212 = vld [vmem:[#allocation8 + $0x48] sm:$0xff]
    %v213 = vld [vmem:[#allocation8 + $0x50] sm:$0xff]
    %v214 = vld [vmem:[#allocation8 + $0x58] sm:$0xff]
    %v215 = vld [vmem:[#allocation8 + $0x60] sm:$0xff]
    %v216 = vld [vmem:[#allocation8 + $0x68] sm:$0xff]
    %v217 = vld [vmem:[#allocation8 + $0x70] sm:$0xff]
    %v218 = vld [vmem:[#allocation8 + $0x78] sm:$0xff]
    %v219 = vld [vmem:[%s6] sm:$0x1]
    %v221 = vperm.slane %v219, 0
    %223 = vmatpush.msra.mxu0 %v218
    %224 = vmatpush.msra.mxu0 %v217
    %225 = vmatpush.msra.mxu0 %v216
    %226 = vmatpush.msra.mxu0 %v215
    %227 = vmatpush.msra.mxu0 %v214
    %228 = vmatpush.msra.mxu0 %v213
    %229 = vmatpush.msra.mxu0 %v212
    %230 = vmatpush.msra.mxu0 %v211
    %231 = vmatpush.msra.mxu0 %v210
    %232 = vmatpush.msra.mxu0 %v209
    %233 = vmatpush.msra.mxu0 %v208
    %234 = vmatpush.msra.mxu0 %v207
    %235 = vmatpush.msra.mxu0 %v206
    %236 = vmatpush.msra.mxu0 %v205
    %237 = vmatpush.msra.mxu0 %v204
    %238 = vmatpush.msra.mxu0 %v203
    %239 = vmatmul.f32.gmra.mxu0 %v201
    %v240 = vpop.f32.mrf.mxu0
    %v241 = vadd.f32 %v221, %v240
    %242 = vmatmul.f32.gmra.mxu0 %v202
    %v243 = vpop.f32.mrf.mxu0
    %v244 = vadd.f32 %v221, %v243
    %245 = vdwg.mxu0
    %v246 = vmax.f32 %v241, 0.0
    %v247 = vmax.f32 %v244, 0.0
    %v248 = vld [vmem:[#allocation10] sm:$0xff]
    %v249 = vld [vmem:[#allocation10 + $0x8] sm:$0xff]
    %v250 = vld [vmem:[#allocation10 + $0x10] sm:$0xff]
    %v251 = vld [vmem:[#allocation10 + $0x18] sm:$0xff]
    %v252 = vld [vmem:[#allocation10 + $0x20] sm:$0xff]
    %v253 = vld [vmem:[#allocation10 + $0x28] sm:$0xff]
    %v254 = vld [vmem:[#allocation10 + $0x30] sm:$0xff]
    %v255 = vld [vmem:[#allocation10 + $0x38] sm:$0xff]
    %v256 = vld [vmem:[#allocation10 + $0x40] sm:$0xff]
    %v257 = vld [vmem:[#allocation10 + $0x48] sm:$0xff]
    %v258 = vld [vmem:[#allocation10 + $0x50] sm:$0xff]
    %v259 = vld [vmem:[#allocation10 + $0x58] sm:$0xff]
    %v260 = vld [vmem:[#allocation10 + $0x60] sm:$0xff]
    %v261 = vld [vmem:[#allocation10 + $0x68] sm:$0xff]
    %v262 = vld [vmem:[#allocation10 + $0x70] sm:$0xff]
    %v263 = vld [vmem:[#allocation10 + $0x78] sm:$0xff]
    %v264 = vld [vmem:[%s8] sm:$0x1]
    %v266 = vperm.slane %v264, 0
    %268 = vmatpush.msra.mxu0 %v263
    %269 = vmatpush.msra.mxu0 %v262
    %270 = vmatpush.msra.mxu0 %v261
    %271 = vmatpush.msra.mxu0 %v260
    %272 = vmatpush.msra.mxu0 %v259
    %273 = vmatpush.msra.mxu0 %v258
    %274 = vmatpush.msra.mxu0 %v257
    %275 = vmatpush.msra.mxu0 %v256
    %276 = vmatpush.msra.mxu0 %v255
    %277 = vmatpush.msra.mxu0 %v254
    %278 = vmatpush.msra.mxu0 %v253
    %279 = vmatpush.msra.mxu0 %v252
    %280 = vmatpush.msra.mxu0 %v251
    %281 = vmatpush.msra.mxu0 %v250
    %282 = vmatpush.msra.mxu0 %v249
    %283 = vmatpush.msra.mxu0 %v248
    %284 = vmatmul.f32.gmra.mxu0 %v246
    %v285 = vpop.f32.mrf.mxu0
    %v286 = vadd.f32 %v266, %v285
    %287 = vmatmul.f32.gmra.mxu0 %v247
    %v288 = vpop.f32.mrf.mxu0
    %v289 = vadd.f32 %v266, %v288
    %290 = vdwg.mxu0
    %291 = vst [vmem:[#allocation11] sm:$0xff] %v286
    %292 = vst [vmem:[#allocation11 + $0x8] sm:$0xff] %v289
    // Predicated region
    $region58: #{tpu_custom_call.1} parent=1 // pred_check
      _
    $region59: #{tpu_custom_call.1} parent=1 // pred_check_branch
      %294 = sbr.rel (0) target = $region61
    $region60: #{tpu_custom_call.1} parent=1 // pred_region
      %296 = vsyncadd [#allocation4], 0
      %s297 = sshll.u32 [#allocation11], 4
      %s298 = int_to_ptr.vmem [resolvable:$true] %s297
      %s299 = sshll.u32 %s9, 4
      %s300 = int_to_ptr.hbm [resolvable:$true] %s299
      %305 = dma.vmem_to_hbm [thread:$0]  %s298, 256, %s300, [#allocation4], 128, 128, 8
    $region61: #{tpu_custom_call.1} parent=1 // pred_fallthru
      _
    // Predicated region
    $region62: #{tpu_custom_call.1} parent=1 // pred_check
      _
    $region63: #{tpu_custom_call.1} parent=1 // pred_check_branch
      %307 = sbr.rel (0) target = $region65
    $region64: #{tpu_custom_call.1} parent=1 // pred_region
      %309 = dma.done [#allocation4], 256
    $region65: #{tpu_custom_call.1} parent=1 // pred_fallthru
      _
    %310 = vsyncpa [#allocation3], 1
    %311 = vsyncpa [#allocation6], 1
    %312 = vsyncpa [#allocation9], 1
    %313 = vsyncpa [#allocation4], 1

</llo_original>
